<compile_context>
chip_gen: v5e
topology: v5e:2x2
jax: 0.10.0
libtpu: 0.0.40
codegen_flags: <defaults>
</compile_context>

<pallas_src>
import jax
import jax.numpy as jnp
from jax.experimental import pallas as pl
from jax.experimental.pallas import tpu as pltpu

HIDDEN = (128, 128)      # hidden_neurons from the PyTorch module
IN_FEATURES = 3
K_PAD = 8                # layer-1 K padded 3 -> 8 so it can run on the MXU


def _round_up(n, m):
    return ((n + m - 1) // m) * m


def _pick_tb(batch, max_tb=1024, min_tb=128):
    """Batch tile heuristic.

    - Tiny batches: one step covering the (8-rounded) batch.
    - Otherwise: target ~8 total grid steps (~4 per TC on a 2-core chip) so the
      output writeback pipelines, floored at 128 rows (MXU M-dim stays full)
      and capped at 1024 (still < 3 MiB VMEM with double-buffering).
    - Keep the total step count even so the parallel batch axis splits evenly
      across v7x's two TensorCores.
    """
    batch = max(int(batch), 1)
    if batch <= min_tb:
        return _round_up(batch, 8)
    tb = _round_up(pl.cdiv(batch, 8), 8)
    tb = min(max(tb, min_tb), max_tb)
    steps = pl.cdiv(batch, tb)
    if steps % 2:
        # Shrink the tile a bit to reach an even step count (core balance
        # beats the 128-row floor here; M stays large enough for the MXU).
        tb = max(_round_up(pl.cdiv(batch, steps + 1), 8), 8)
        while tb > 8 and pl.cdiv(batch, tb) % 2:
            tb -= 8
    return tb


def dense_backbone_kernel(x_ref, w1_ref, b1_ref, w2_ref, b2_ref, o_ref):
    # x_ref:  (TB, 8)    f32   input tile, K zero-padded 3->8 (resident weights
    # w1_ref: (8, H0)    f32    have rows 3..7 zeroed, so the pad is exact)
    # b1_ref: (1, H0)    f32
    # w2_ref: (H0, H1)   f32 or bf16 (bf16 = optional v5e fast path)
    # b2_ref: (1, H1)    f32
    # o_ref:  (TB, H1)   f32 or bf16, lane-dense (last dim 128)

    # Layer 1 on the MXU (K=8); accumulation in f32.
    h = jnp.dot(x_ref[...], w1_ref[...], preferred_element_type=jnp.float32)
    h = jnp.maximum(h + b1_ref[...], 0.0)                     # ReLU 1

    # Layer 2 on the MXU. If the wrapper passed W2 as bf16, cast h to bf16 too
    # (inputs bf16, accumulation stays f32) — the main v5e lever.
    h = h.astype(w2_ref.dtype)
    y = jnp.dot(h, w2_ref[...], preferred_element_type=jnp.float32)
    o_ref[...] = jnp.maximum(y + b2_ref[...], 0.0).astype(o_ref.dtype)  # ReLU 2


def dense_backbone(x, w1, b1, w2, b2, *, tb=None,
                   matmul_dtype=jnp.float32, out_dtype=jnp.float32):
    """x: (B, 3) -> (B, HIDDEN[-1]).

    matmul_dtype=jnp.bfloat16 enables the bf16-input / f32-accumulate layer-2
    matmul (recommended on v5e; ~1e-2 relative error vs the f32 reference).
    out_dtype=jnp.bfloat16 halves the output writeback if the consumer allows.
    """
    B, F = x.shape
    assert F == IN_FEATURES
    H0, H1 = HIDDEN
    assert w1.shape == (IN_FEATURES, H0) and w2.shape == (H0, H1)

    TB = int(tb) if tb is not None else _pick_tb(B)
    grid = (pl.cdiv(B, TB),)

    # Host-side K pad (3 -> 8): ~20 extra B/row of input HBM vs ~512 B/row of
    # output — noise — and it moves layer 1 off the saturated VALU slot.
    x8 = jnp.pad(x.astype(jnp.float32), ((0, 0), (0, K_PAD - IN_FEATURES)))
    w1_p = jnp.pad(w1.astype(jnp.float32), ((0, K_PAD - IN_FEATURES), (0, 0)))
    b1_2d = b1.reshape(1, H0).astype(jnp.float32)
    b2_2d = b2.reshape(1, H1).astype(jnp.float32)
    w2_in = w2.astype(matmul_dtype)   # bf16 host-side also halves resident VMEM

    return pl.pallas_call(
        dense_backbone_kernel,
        out_shape=jax.ShapeDtypeStruct((B, H1), out_dtype),
        grid_spec=pl.GridSpec(
            grid=grid,
            in_specs=[
                # x streamed per batch tile; last dim (8) equals the full
                # array dim so the (8,128) blocking rule is satisfied.
                pl.BlockSpec((TB, K_PAD), lambda i: (i, 0)),
                pl.BlockSpec((K_PAD, H0), lambda i: (0, 0)),   # W1 resident
                pl.BlockSpec((1, H0), lambda i: (0, 0)),       # b1 resident
                pl.BlockSpec((H0, H1), lambda i: (0, 0)),      # W2 resident
                pl.BlockSpec((1, H1), lambda i: (0, 0)),       # b2 resident
            ],
            out_specs=pl.BlockSpec((TB, H1), lambda i: (i, 0)),  # lane-dense
        ),
        compiler_params=pltpu.CompilerParams(
            dimension_semantics=("parallel",)),
    )(x8, w1_p, b1_2d, w2_in, b2_2d)


def init_params(key):
    """Mimic torch.nn.Linear default init: U(-1/sqrt(fan_in), 1/sqrt(fan_in))."""
    k1, k2, k3, k4 = jax.random.split(key, 4)
    H0, H1 = HIDDEN
    bound1 = 1.0 / jnp.sqrt(IN_FEATURES)
    bound2 = 1.0 / jnp.sqrt(H0)
    w1 = jax.random.uniform(k1, (IN_FEATURES, H0), jnp.float32, -bound1, bound1)
    b1 = jax.random.uniform(k2, (H0,), jnp.float32, -bound1, bound1)
    w2 = jax.random.uniform(k3, (H0, H1), jnp.float32, -bound2, bound2)
    b2 = jax.random.uniform(k4, (H1,), jnp.float32, -bound2, bound2)
    return w1, b1, w2, b2


def reference(x, w1, b1, w2, b2):
    h = jnp.maximum(x @ w1 + b1, 0.0)
    return jnp.maximum(h @ w2 + b2, 0.0)


if __name__ == "__main__":
    key = jax.random.PRNGKey(0)
    kx1, kx2, kx3, kx4, kp = jax.random.split(key, 5)
    w1, b1, w2, b2 = init_params(kp)

    # 1) Small batch, single grid step, default f32 path.
    B = 8
    x = jax.random.normal(kx1, (B, IN_FEATURES), jnp.float32)
    out = jax.block_until_ready(dense_backbone(x, w1, b1, w2, b2))
    ref = reference(x, w1, b1, w2, b2)
    assert out.shape == (B, HIDDEN[-1])
    assert jnp.allclose(out, ref, atol=1e-5, rtol=1e-5), "mismatch (B=8)"

    # 2) Ragged batch, forced small tile -> multiple grid steps with a partial
    #    last block (exercises masked output stores).
    B2 = 20
    x2 = jax.random.normal(kx2, (B2, IN_FEATURES), jnp.float32)
    out2 = jax.block_until_ready(dense_backbone(x2, w1, b1, w2, b2, tb=8))
    ref2 = reference(x2, w1, b1, w2, b2)
    assert jnp.allclose(out2, ref2, atol=1e-5, rtol=1e-5), "mismatch (B=20)"

    # 3) Mid-size batch, default heuristic: even multi-step grid + ragged tail.
    B3 = 260
    x3 = jax.random.normal(kx3, (B3, IN_FEATURES), jnp.float32)
    out3 = jax.block_until_ready(dense_backbone(x3, w1, b1, w2, b2))
    ref3 = reference(x3, w1, b1, w2, b2)
    assert jnp.allclose(out3, ref3, atol=1e-4, rtol=1e-4), "mismatch (B=260)"

    # 4) Optional bf16 matmul + bf16 output path (v5e lever); looser tolerance.
    B4 = 16
    x4 = jax.random.normal(kx4, (B4, IN_FEATURES), jnp.float32)
    out4 = jax.block_until_ready(
        dense_backbone(x4, w1, b1, w2, b2,
                       matmul_dtype=jnp.bfloat16, out_dtype=jnp.bfloat16))
    ref4 = reference(x4, w1, b1, w2, b2)
    assert out4.dtype == jnp.bfloat16
    assert jnp.allclose(out4.astype(jnp.float32), ref4, atol=5e-2, rtol=5e-2), \
        "mismatch (bf16 path)"

    print("KERNEL_OK")
</pallas_src>

<mosaic_0001>
module attributes {stable_mosaic.version = 11 : i64} {
  func.func @dense_backbone_kernel(%arg0: i32, %arg1: memref<8x8xf32, #tpu.memory_space<vmem>>, %arg2: memref<8x128xf32, #tpu.memory_space<vmem>>, %arg3: memref<1x128xf32, #tpu.memory_space<vmem>>, %arg4: memref<128x128xf32, #tpu.memory_space<vmem>>, %arg5: memref<1x128xf32, #tpu.memory_space<vmem>>, %arg6: memref<8x128xf32, #tpu.memory_space<vmem>>) attributes {dimension_semantics = [#tpu.dimension_semantics<parallel>], iteration_bounds = array<i64: 1>, scalar_prefetch = 0 : i64, scratch_operands = 0 : i64, tpu.core_type = #tpu.core_type<tc>, window_params = [{transform_indices = @transform_0, window_bounds = array<i64: 8, 8>}, {pipeline_mode = #tpu.pipeline_mode<synchronous>, transform_indices = @transform_1, window_bounds = array<i64: 8, 128>}, {pipeline_mode = #tpu.pipeline_mode<synchronous>, transform_indices = @transform_2, window_bounds = array<i64: 1, 128>}, {pipeline_mode = #tpu.pipeline_mode<synchronous>, transform_indices = @transform_3, window_bounds = array<i64: 128, 128>}, {pipeline_mode = #tpu.pipeline_mode<synchronous>, transform_indices = @transform_4, window_bounds = array<i64: 1, 128>}, {transform_indices = @transform_5, window_bounds = array<i64: 8, 128>}]} {
    %c0 = arith.constant 0 : index
    %c0_0 = arith.constant 0 : index
    %0 = vector.load %arg1[%c0, %c0_0] : memref<8x8xf32, #tpu.memory_space<vmem>>, vector<8x8xf32>
    %c0_1 = arith.constant 0 : index
    %c0_2 = arith.constant 0 : index
    %1 = vector.load %arg2[%c0_1, %c0_2] : memref<8x128xf32, #tpu.memory_space<vmem>>, vector<8x128xf32>
    %cst = arith.constant dense<0.000000e+00> : vector<8x128xf32>
    %2 = tpu.matmul %0, %1, %cst {dimension_numbers = #tpu.dot_dimension_numbers<[1], [0], [0], [1], [0, 0, 1, 1], [], []>} : vector<8x8xf32>, vector<8x128xf32>, vector<8x128xf32> -> vector<8x128xf32>
    %c0_3 = arith.constant 0 : index
    %c0_4 = arith.constant 0 : index
    %3 = vector.load %arg3[%c0_3, %c0_4] : memref<1x128xf32, #tpu.memory_space<vmem>>, vector<1x128xf32>
    %4 = vector.broadcast %3 : vector<1x128xf32> to vector<8x128xf32>
    %5 = arith.addf %2, %4 : vector<8x128xf32>
    %cst_5 = arith.constant 0.000000e+00 : f32
    %6 = vector.broadcast %cst_5 : f32 to vector<8x128xf32>
    %7 = arith.maximumf %5, %6 : vector<8x128xf32>
    %c0_6 = arith.constant 0 : index
    %c0_7 = arith.constant 0 : index
    %8 = vector.load %arg4[%c0_6, %c0_7] : memref<128x128xf32, #tpu.memory_space<vmem>>, vector<128x128xf32>
    %cst_8 = arith.constant dense<0.000000e+00> : vector<8x128xf32>
    %9 = tpu.matmul %7, %8, %cst_8 {dimension_numbers = #tpu.dot_dimension_numbers<[1], [0], [0], [1], [0, 0, 1, 1], [], []>} : vector<8x128xf32>, vector<128x128xf32>, vector<8x128xf32> -> vector<8x128xf32>
    %c0_9 = arith.constant 0 : index
    %c0_10 = arith.constant 0 : index
    %10 = vector.load %arg5[%c0_9, %c0_10] : memref<1x128xf32, #tpu.memory_space<vmem>>, vector<1x128xf32>
    %11 = vector.broadcast %10 : vector<1x128xf32> to vector<8x128xf32>
    %12 = arith.addf %9, %11 : vector<8x128xf32>
    %cst_11 = arith.constant 0.000000e+00 : f32
    %13 = vector.broadcast %cst_11 : f32 to vector<8x128xf32>
    %14 = arith.maximumf %12, %13 : vector<8x128xf32>
    %c0_12 = arith.constant 0 : index
    %c0_13 = arith.constant 0 : index
    %15 = vector.load %arg6[%c0_12, %c0_13] : memref<8x128xf32, #tpu.memory_space<vmem>>, vector<8x128xf32>
    tpu.vector_store %arg6[%c0_12, %c0_13], %14 {strides = array<i32>} : memref<8x128xf32, #tpu.memory_space<vmem>>, vector<8x128xf32>,
    return
  }
  func.func @transform_0(%arg0: i32) -> (i32, i32) {
    %c0_i32 = arith.constant 0 : i32
    %c0_i32_0 = arith.constant 0 : i32
    return %arg0, %c0_i32 : i32, i32
  }
  func.func @transform_1(%arg0: i32) -> (i32, i32) {
    %c0_i32 = arith.constant 0 : i32
    %c0_i32_0 = arith.constant 0 : i32
    %c0_i32_1 = arith.constant 0 : i32
    return %c0_i32, %c0_i32_0 : i32, i32
  }
  func.func @transform_2(%arg0: i32) -> (i32, i32) {
    %c0_i32 = arith.constant 0 : i32
    %c0_i32_0 = arith.constant 0 : i32
    %c0_i32_1 = arith.constant 0 : i32
    return %c0_i32, %c0_i32_0 : i32, i32
  }
  func.func @transform_3(%arg0: i32) -> (i32, i32) {
    %c0_i32 = arith.constant 0 : i32
    %c0_i32_0 = arith.constant 0 : i32
    %c0_i32_1 = arith.constant 0 : i32
    return %c0_i32, %c0_i32_0 : i32, i32
  }
  func.func @transform_4(%arg0: i32) -> (i32, i32) {
    %c0_i32 = arith.constant 0 : i32
    %c0_i32_0 = arith.constant 0 : i32
    %c0_i32_1 = arith.constant 0 : i32
    return %c0_i32, %c0_i32_0 : i32, i32
  }
  func.func @transform_5(%arg0: i32) -> (i32, i32) {
    %c0_i32 = arith.constant 0 : i32
    %c0_i32_0 = arith.constant 0 : i32
    return %arg0, %c0_i32 : i32, i32
  }
}

</mosaic_0001>

<llo_original>
// kernel: tpu_custom_call.1
$region0: #{tpu_custom_call.1}
  #allocation0 [shape = 'u32[]', space=smem, size = 0x4, offset = 0x4, fixed_abs, tag = 'smem constant byte address 0x4 - core index']
  #allocation1 [shape = 'u32[72,128]{1,0:T(1,128)}', space=vmem, size = 0x9000, scoped, tag = 'internal scratch']
  %s0 = inlined_call_operand.hbm [shape: f32[8,8], index: 0, kind: input, shape index: {}]
  %s1 = inlined_call_operand.hbm [shape: f32[8,128], index: 1, kind: input, shape index: {}]
  %s2 = inlined_call_operand.vmem [shape: f32[1,128], index: 2, kind: input, shape index: {}]
  %s3 = inlined_call_operand.hbm [shape: f32[128,128], index: 3, kind: input, shape index: {}]
  %s4 = inlined_call_operand.vmem [shape: f32[1,128], index: 4, kind: input, shape index: {}]
  %s5 = inlined_call_operand.hbm [shape: f32[8,128], index: 5, kind: output, shape index: {}]
  %s6 = sld [smem:[#allocation0]]
  $region42: #{tpu_custom_call.1} parent=0
    _
  %s8 = ssub.s32 1, %s6
  %s9 = scalar_select 0, %s8, %s6
  $region1: #{tpu_custom_call.1} parent=0
    #allocation2 [shape = 'u8[4096]{0}', space=vmem, size = 0x1000, scoped, tag = 'input window, operand 0, single buffered']
    #allocation3 [shape = 's32[1]{0}', space=sflag, size = 0x4, scoped, tag = 'scoped memory for tpu_custom_call.1']
    #allocation4 [shape = 's32[1]{0}', space=sflag, size = 0x4, scoped, tag = 'scoped memory for tpu_custom_call.1']
    #allocation5 [shape = 'u8[4096]{0}', space=vmem, size = 0x1000, scoped, tag = 'input window, operand 1, single buffered']
    #allocation6 [shape = 's32[1]{0}', space=sflag, size = 0x4, scoped, tag = 'scoped memory for tpu_custom_call.1']
    #allocation7 [shape = 'u8[65536]{0}', space=vmem, size = 0x10000, scoped, tag = 'input window, operand 3, single buffered']
    #allocation8 [shape = 'u8[4096]{0}', space=vmem, size = 0x1000, scoped, tag = 'output window, operand 0, single buffered']
    %10 = vsyncpa [#allocation3], 0
    %11 = vsyncpa [#allocation6], 0
    %12 = vsyncpa [#allocation4], 0
    // Predicated region
    $region2: #{tpu_custom_call.1} parent=1 // pred_check
      _
    $region3: #{tpu_custom_call.1} parent=1 // pred_check_branch
      %14 = sbr.rel (0) target = $region5
    $region4: #{tpu_custom_call.1} parent=1 // pred_region
      %16 = vsyncadd [#allocation3], 0
      %s18 = sshll.u32 %s0, 4
      %s19 = int_to_ptr.hbm [resolvable:$true] %s18
      %s20 = sshll.u32 [#allocation2], 4
      %s21 = int_to_ptr.vmem [resolvable:$true] %s20
      %23 = dma.hbm_to_vmem [thread:$0]  %s19, 128, %s21, [#allocation3]
    $region5: #{tpu_custom_call.1} parent=1 // pred_fallthru
      _
    // Predicated region
    $region6: #{tpu_custom_call.1} parent=1 // pred_check
      _
    $region7: #{tpu_custom_call.1} parent=1 // pred_check_branch
      %25 = sbr.rel (0) target = $region9
    $region8: #{tpu_custom_call.1} parent=1 // pred_region
      %27 = vsyncadd [#allocation6], 0
      %s29 = sshll.u32 %s1, 4
      %s30 = int_to_ptr.hbm [resolvable:$true] %s29
      %s31 = sshll.u32 [#allocation5], 4
      %s32 = int_to_ptr.vmem [resolvable:$true] %s31
      %34 = dma.hbm_to_vmem [thread:$0]  %s30, 128, %s32, [#allocation6]
    $region9: #{tpu_custom_call.1} parent=1 // pred_fallthru
      _
    // Predicated region
    $region10: #{tpu_custom_call.1} parent=1 // pred_check
      _
    $region11: #{tpu_custom_call.1} parent=1 // pred_check_branch
      %36 = sbr.rel (0) target = $region13
    $region12: #{tpu_custom_call.1} parent=1 // pred_region
      _
    $region13: #{tpu_custom_call.1} parent=1 // pred_fallthru
      _
    // Predicated region
    $region14: #{tpu_custom_call.1} parent=1 // pred_check
      _
    $region15: #{tpu_custom_call.1} parent=1 // pred_check_branch
      %38 = sbr.rel (0) target = $region17
    $region16: #{tpu_custom_call.1} parent=1 // pred_region
      %40 = vsyncadd [#allocation6], 0
      %s41 = sshll.u32 %s3, 4
      %s42 = int_to_ptr.hbm [resolvable:$true] %s41
      %s43 = sshll.u32 [#allocation7], 4
      %s44 = int_to_ptr.vmem [resolvable:$true] %s43
      %49 = dma.hbm_to_vmem [thread:$0]  %s42, 2048, %s44, [#allocation6], 128, 128, 8
    $region17: #{tpu_custom_call.1} parent=1 // pred_fallthru
      _
    // Predicated region
    $region18: #{tpu_custom_call.1} parent=1 // pred_check
      _
    $region19: #{tpu_custom_call.1} parent=1 // pred_check_branch
      %51 = sbr.rel (0) target = $region21
    $region20: #{tpu_custom_call.1} parent=1 // pred_region
      _
    $region21: #{tpu_custom_call.1} parent=1 // pred_fallthru
      _
    // Predicated region
    $region22: #{tpu_custom_call.1} parent=1 // pred_check
      _
    $region23: #{tpu_custom_call.1} parent=1 // pred_check_branch
      %53 = sbr.rel (0) target = $region25
    $region24: #{tpu_custom_call.1} parent=1 // pred_region
      %55 = dma.done [#allocation3], 128
    $region25: #{tpu_custom_call.1} parent=1 // pred_fallthru
      _
    // Predicated region
    $region26: #{tpu_custom_call.1} parent=1 // pred_check
      _
    $region27: #{tpu_custom_call.1} parent=1 // pred_check_branch
      %57 = sbr.rel (0) target = $region29
    $region28: #{tpu_custom_call.1} parent=1 // pred_region
      %59 = dma.done [#allocation6], 128
    $region29: #{tpu_custom_call.1} parent=1 // pred_fallthru
      _
    // Predicated region
    $region30: #{tpu_custom_call.1} parent=1 // pred_check
      _
    $region31: #{tpu_custom_call.1} parent=1 // pred_check_branch
      %61 = sbr.rel (0) target = $region33
    $region32: #{tpu_custom_call.1} parent=1 // pred_region
      %63 = dma.done [#allocation6], 2048
    $region33: #{tpu_custom_call.1} parent=1 // pred_fallthru
      _
    %v64 = vld [vmem:[#allocation2] sm:$0xff]
    %v65 = vld [vmem:[#allocation5] sm:$0xff]
    %v66 = vld [vmem:[%s2] sm:$0x1]
    %v68 = vperm.slane %v66, 0
    %vm70 = vcmask 64512
    %v72 = vsel %vm70, %v64, 0
    %74 = vmatpush.msra.mxu0 0.0
    %75 = vmatpush.msra.mxu0 0.0
    %76 = vmatpush.msra.mxu0 0.0
    %77 = vmatpush.msra.mxu0 0.0
    %78 = vmatpush.msra.mxu0 0.0
    %79 = vmatpush.msra.mxu0 0.0
    %80 = vmatpush.msra.mxu0 0.0
    %81 = vmatpush.msra.mxu0 0.0
    %82 = vmatpush.msra.mxu0 0.0
    %83 = vmatpush.msra.mxu0 0.0
    %84 = vmatpush.msra.mxu0 0.0
    %85 = vmatpush.msra.mxu0 0.0
    %86 = vmatpush.msra.mxu0 0.0
    %87 = vmatpush.msra.mxu0 0.0
    %88 = vmatpush.msra.mxu0 0.0
    %89 = vmatpush.msra.mxu0 %v65
    %90 = vmatmul.f32.gmra.mxu0 %v72
    %v91 = vpop.f32.mrf.mxu0
    %v92 = vadd.f32 %v68, %v91
    %93 = vdwg.mxu0
    %v94 = vmax.f32 %v92, 0.0
    %v95 = vld [vmem:[#allocation7] sm:$0xff]
    %v96 = vld [vmem:[#allocation7 + $0x8] sm:$0xff]
    %v97 = vld [vmem:[#allocation7 + $0x10] sm:$0xff]
    %v98 = vld [vmem:[#allocation7 + $0x18] sm:$0xff]
    %v99 = vld [vmem:[#allocation7 + $0x20] sm:$0xff]
    %v100 = vld [vmem:[#allocation7 + $0x28] sm:$0xff]
    %v101 = vld [vmem:[#allocation7 + $0x30] sm:$0xff]
    %v102 = vld [vmem:[#allocation7 + $0x38] sm:$0xff]
    %v103 = vld [vmem:[#allocation7 + $0x40] sm:$0xff]
    %v104 = vld [vmem:[#allocation7 + $0x48] sm:$0xff]
    %v105 = vld [vmem:[#allocation7 + $0x50] sm:$0xff]
    %v106 = vld [vmem:[#allocation7 + $0x58] sm:$0xff]
    %v107 = vld [vmem:[#allocation7 + $0x60] sm:$0xff]
    %v108 = vld [vmem:[#allocation7 + $0x68] sm:$0xff]
    %v109 = vld [vmem:[#allocation7 + $0x70] sm:$0xff]
    %v110 = vld [vmem:[#allocation7 + $0x78] sm:$0xff]
    %v111 = vld [vmem:[%s4] sm:$0x1]
    %v113 = vperm.slane %v111, 0
    %115 = vmatpush.msra.mxu0 %v110
    %116 = vmatpush.msra.mxu0 %v109
    %117 = vmatpush.msra.mxu0 %v108
    %118 = vmatpush.msra.mxu0 %v107
    %119 = vmatpush.msra.mxu0 %v106
    %120 = vmatpush.msra.mxu0 %v105
    %121 = vmatpush.msra.mxu0 %v104
    %122 = vmatpush.msra.mxu0 %v103
    %123 = vmatpush.msra.mxu0 %v102
    %124 = vmatpush.msra.mxu0 %v101
    %125 = vmatpush.msra.mxu0 %v100
    %126 = vmatpush.msra.mxu0 %v99
    %127 = vmatpush.msra.mxu0 %v98
    %128 = vmatpush.msra.mxu0 %v97
    %129 = vmatpush.msra.mxu0 %v96
    %130 = vmatpush.msra.mxu0 %v95
    %131 = vmatmul.f32.gmra.mxu0 %v94
    %v132 = vpop.f32.mrf.mxu0
    %v133 = vadd.f32 %v113, %v132
    %134 = vdwg.mxu0
    %v135 = vmax.f32 %v133, 0.0
    %136 = vst [vmem:[#allocation8] sm:$0xff] %v135
    // Predicated region
    $region34: #{tpu_custom_call.1} parent=1 // pred_check
      _
    $region35: #{tpu_custom_call.1} parent=1 // pred_check_branch
      %138 = sbr.rel (0) target = $region37
    $region36: #{tpu_custom_call.1} parent=1 // pred_region
      %140 = vsyncadd [#allocation4], 0
      %s142 = sshll.u32 [#allocation8], 4
      %s143 = int_to_ptr.vmem [resolvable:$true] %s142
      %s144 = sshll.u32 %s5, 4
      %s145 = int_to_ptr.hbm [resolvable:$true] %s144
      %147 = dma.vmem_to_hbm [thread:$0]  %s143, 128, %s145, [#allocation4]
    $region37: #{tpu_custom_call.1} parent=1 // pred_fallthru
      _
    // Predicated region
    $region38: #{tpu_custom_call.1} parent=1 // pred_check
      _
    $region39: #{tpu_custom_call.1} parent=1 // pred_check_branch
      %149 = sbr.rel (0) target = $region41
    $region40: #{tpu_custom_call.1} parent=1 // pred_region
      %151 = dma.done [#allocation4], 128
    $region41: #{tpu_custom_call.1} parent=1 // pred_fallthru
      _
    %152 = vsyncpa [#allocation3], 1
    %153 = vsyncpa [#allocation6], 1
    %154 = vsyncpa [#allocation4], 1

</llo_original>
